<compile_context>
chip_gen: v6e
topology: v6e:2x2x1
jax: 0.10.0
libtpu: 0.0.40
codegen_flags: <defaults>
</compile_context>

<pallas_src>
import jax
import jax.numpy as jnp
from jax.experimental import pallas as pl
from jax.experimental.pallas import tpu as pltpu


def actor_critic_kernel(x_ref, w1_ref, b1_ref, w2_ref, b2_ref, out_ref):
    # Fused first layer: [TILE_B, NI](bf16) @ [NI, 2H](bf16) -> f32 acc
    #   columns [0:H)  = critic hidden, columns [H:2H) = actor hidden
    h = jnp.dot(x_ref[...], w1_ref[...],
                preferred_element_type=jnp.float32) + b1_ref[...]
    h = jnp.maximum(h, 0.0)
    # Fused block-diagonal second layer: [TILE_B, 2H] @ [2H, OUT]
    #   lane 0     = value  (hc @ wc2 + bc2)
    #   lanes 1..A = mu     (ha @ wa2 + ba2)
    out = jnp.dot(h.astype(jnp.bfloat16), w2_ref[...],
                  preferred_element_type=jnp.float32) + b2_ref[...]
    out_ref[...] = out.astype(out_ref.dtype)


def pack_params(params):
    """Pack per-layer weights into 2 fused matmul operands (+ their biases).

    Weights are stored bf16 (MXU-native); biases stay f32 (added post-acc)."""
    wc1, bc1 = params["wc1"], params["bc1"]
    wc2, bc2 = params["wc2"], params["bc2"]
    wa1, ba1 = params["wa1"], params["ba1"]
    wa2, ba2 = params["wa2"], params["ba2"]
    H = wc1.shape[1]
    A = wa2.shape[1]
    OUT = A + 1                                           # value + mu lanes only

    w1 = jnp.concatenate([wc1, wa1], axis=1)              # [NI, 2H]
    b1 = jnp.concatenate([bc1, ba1], axis=1)              # [1, 2H]

    w2 = jnp.zeros((2 * H, OUT), jnp.float32)
    w2 = w2.at[:H, 0:1].set(wc2)                          # critic block -> lane 0
    w2 = w2.at[H:, 1:1 + A].set(wa2)                      # actor block  -> lanes 1..A
    b2 = jnp.zeros((1, OUT), jnp.float32)
    b2 = b2.at[0, 0:1].set(bc2[0])
    b2 = b2.at[0, 1:1 + A].set(ba2[0])

    return {
        "w1": w1.astype(jnp.bfloat16),
        "b1": b1.astype(jnp.float32),
        "w2": w2.astype(jnp.bfloat16),
        "b2": b2.astype(jnp.float32),
        "log_std": params["log_std"],
        "num_outputs": A,
    }


def _round_up(n, m):
    return ((n + m - 1) // m) * m


def actor_critic_forward(x, packed):
    """x: [B, num_inputs] float32. Returns (mu, std, value)."""
    B, NI = x.shape
    A = packed["num_outputs"]
    OUT = A + 1
    w1, b1, w2, b2 = packed["w1"], packed["b1"], packed["w2"], packed["b2"]
    H2 = w1.shape[1]

    # Batch tiling: resident weights, pipelined/parallel batch axis.
    # Multiple of 8 (sublane-aligned), cap 2048, and >= 2 grid steps whenever
    # B allows so both v7x TensorCores get work.  Ragged last block is fine.
    TILE_B = max(8, min(2048, _round_up(pl.cdiv(B, 2), 8)))
    if TILE_B >= B:
        TILE_B = B                       # single block equal to the full dim
    grid = (pl.cdiv(B, TILE_B),)

    x_bf16 = x.astype(jnp.bfloat16)

    full_spec = lambda shape: pl.BlockSpec(shape, lambda i: (0, 0))

    # Rough scoped-VMEM estimate; only override the default when we'd exceed it.
    est_bytes = (2 * TILE_B * NI * 2          # x, double-buffered, bf16
                 + 2 * TILE_B * OUT * 4       # out, double-buffered, f32
                 + 2 * (NI * H2 * 2 + H2 * OUT * 2)   # bf16 weights (dbl-buffered)
                 + 2 * (H2 * 4 + OUT * 4))            # f32 biases
    vmem_limit = None
    if est_bytes > (24 << 20):
        vmem_limit = min(2 * est_bytes, 64 << 20)   # stay inside v7x physical VMEM

    cost = pl.CostEstimate(
        flops=2 * B * (NI * H2 + H2 * OUT),
        transcendentals=0,
        bytes_accessed=(B * NI * 2 + B * OUT * 4
                        + NI * H2 * 2 + H2 * OUT * 2 + H2 * 4 + OUT * 4),
    )

    out = pl.pallas_call(
        actor_critic_kernel,
        out_shape=jax.ShapeDtypeStruct((B, OUT), jnp.float32),
        grid=grid,
        in_specs=[
            pl.BlockSpec((TILE_B, NI), lambda i: (i, 0)),   # x: tiled over batch
            full_spec((NI, H2)),                            # fused W1 (resident)
            full_spec((1, H2)),                             # fused b1 (resident)
            full_spec((H2, OUT)),                           # fused block-diag W2
            full_spec((1, OUT)),                            # fused b2
        ],
        out_specs=pl.BlockSpec((TILE_B, OUT), lambda i: (i, 0)),
        compiler_params=pltpu.CompilerParams(
            dimension_semantics=("parallel",),
            vmem_limit_bytes=vmem_limit),
        cost_estimate=cost,
    )(x_bf16, w1, b1, w2, b2)

    value = out[:, 0:1]
    mu = out[:, 1:1 + A]
    # std is batch-independent: compute exp once outside the kernel (f32 exact).
    std = jnp.broadcast_to(jnp.exp(packed["log_std"]), mu.shape)
    return mu, std, value


def init_params(key, num_inputs, num_outputs, hidden_size, std=0.0):
    """Mirrors init_weights: Linear weights ~ N(0, 0.1), biases = 0.1,
    log_std = ones(1, num_outputs) * std. Weights stored as [in, out]."""
    ks = jax.random.split(key, 4)
    return {
        "wc1": 0.1 * jax.random.normal(ks[0], (num_inputs, hidden_size), jnp.float32),
        "bc1": jnp.full((1, hidden_size), 0.1, jnp.float32),
        "wc2": 0.1 * jax.random.normal(ks[1], (hidden_size, 1), jnp.float32),
        "bc2": jnp.full((1, 1), 0.1, jnp.float32),
        "wa1": 0.1 * jax.random.normal(ks[2], (num_inputs, hidden_size), jnp.float32),
        "ba1": jnp.full((1, hidden_size), 0.1, jnp.float32),
        "wa2": 0.1 * jax.random.normal(ks[3], (hidden_size, num_outputs), jnp.float32),
        "ba2": jnp.full((1, num_outputs), 0.1, jnp.float32),
        "log_std": jnp.full((1, num_outputs), std, jnp.float32),
    }


if __name__ == "__main__":
    B, NUM_INPUTS, NUM_OUTPUTS, HIDDEN = 8, 32, 4, 32

    key = jax.random.PRNGKey(0)
    k_x, k_p = jax.random.split(key)
    x = jax.random.normal(k_x, (B, NUM_INPUTS), jnp.float32)
    params = init_params(k_p, NUM_INPUTS, NUM_OUTPUTS, HIDDEN, std=0.0)
    packed = pack_params(params)

    mu, std, value = actor_critic_forward(x, packed)
    jax.block_until_ready((mu, std, value))

    # Pure-JAX f32 reference of the original (unfused) forward pass.
    hc = jnp.maximum(x @ params["wc1"] + params["bc1"], 0.0)
    value_ref = hc @ params["wc2"] + params["bc2"]
    ha = jnp.maximum(x @ params["wa1"] + params["ba1"], 0.0)
    mu_ref = ha @ params["wa2"] + params["ba2"]
    std_ref = jnp.broadcast_to(jnp.exp(params["log_std"]), mu_ref.shape)

    assert mu.shape == mu_ref.shape and value.shape == value_ref.shape
    # bf16 matmul operands (f32 accumulation): loosened tolerance.
    assert jnp.allclose(mu, mu_ref, atol=2e-2), "mu mismatch"
    assert jnp.allclose(std, std_ref, atol=1e-6), "std mismatch"
    assert jnp.allclose(value, value_ref, atol=2e-2), "value mismatch"

    # TODO(synk): Normal(mu, std) distribution object itself has no Pallas
    # equivalent; the kernel returns its parameters (mu, std) plus value.
    print("KERNEL_OK")
</pallas_src>

<mosaic_0001>
module attributes {stable_mosaic.version = 11 : i64} {
  func.func @actor_critic_kernel(%arg0: i32, %arg1: memref<8x32xbf16, #tpu.memory_space<vmem>>, %arg2: memref<32x64xbf16, #tpu.memory_space<vmem>>, %arg3: memref<1x64xf32, #tpu.memory_space<vmem>>, %arg4: memref<64x5xbf16, #tpu.memory_space<vmem>>, %arg5: memref<1x5xf32, #tpu.memory_space<vmem>>, %arg6: memref<8x5xf32, #tpu.memory_space<vmem>>) attributes {dimension_semantics = [#tpu.dimension_semantics<parallel>], iteration_bounds = array<i64: 1>, scalar_prefetch = 0 : i64, scratch_operands = 0 : i64, tpu.core_type = #tpu.core_type<tc>, window_params = [{transform_indices = @transform_0, window_bounds = array<i64: 8, 32>}, {pipeline_mode = #tpu.pipeline_mode<synchronous>, transform_indices = @transform_1, window_bounds = array<i64: 32, 64>}, {pipeline_mode = #tpu.pipeline_mode<synchronous>, transform_indices = @transform_2, window_bounds = array<i64: 1, 64>}, {pipeline_mode = #tpu.pipeline_mode<synchronous>, transform_indices = @transform_3, window_bounds = array<i64: 64, 5>}, {pipeline_mode = #tpu.pipeline_mode<synchronous>, transform_indices = @transform_4, window_bounds = array<i64: 1, 5>}, {transform_indices = @transform_5, window_bounds = array<i64: 8, 5>}]} {
    %c0 = arith.constant 0 : index
    %c0_0 = arith.constant 0 : index
    %0 = vector.load %arg1[%c0, %c0_0] : memref<8x32xbf16, #tpu.memory_space<vmem>>, vector<8x32xbf16>
    %c0_1 = arith.constant 0 : index
    %c0_2 = arith.constant 0 : index
    %1 = vector.load %arg2[%c0_1, %c0_2] : memref<32x64xbf16, #tpu.memory_space<vmem>>, vector<32x64xbf16>
    %cst = arith.constant dense<0.000000e+00> : vector<8x64xf32>
    %2 = tpu.matmul %0, %1, %cst {dimension_numbers = #tpu.dot_dimension_numbers<[1], [0], [0], [1], [0, 0, 1, 1], [], []>} : vector<8x32xbf16>, vector<32x64xbf16>, vector<8x64xf32> -> vector<8x64xf32>
    %c0_3 = arith.constant 0 : index
    %c0_4 = arith.constant 0 : index
    %3 = vector.load %arg3[%c0_3, %c0_4] : memref<1x64xf32, #tpu.memory_space<vmem>>, vector<1x64xf32>
    %4 = vector.broadcast %3 : vector<1x64xf32> to vector<8x64xf32>
    %5 = arith.addf %2, %4 : vector<8x64xf32>
    %cst_5 = arith.constant 0.000000e+00 : f32
    %6 = vector.broadcast %cst_5 : f32 to vector<8x64xf32>
    %7 = arith.maximumf %5, %6 : vector<8x64xf32>
    %8 = arith.truncf %7 : vector<8x64xf32> to vector<8x64xbf16>
    %c0_6 = arith.constant 0 : index
    %c0_7 = arith.constant 0 : index
    %9 = vector.load %arg4[%c0_6, %c0_7] : memref<64x5xbf16, #tpu.memory_space<vmem>>, vector<64x5xbf16>
    %cst_8 = arith.constant dense<0.000000e+00> : vector<8x5xf32>
    %10 = tpu.matmul %8, %9, %cst_8 {dimension_numbers = #tpu.dot_dimension_numbers<[1], [0], [0], [1], [0, 0, 1, 1], [], []>} : vector<8x64xbf16>, vector<64x5xbf16>, vector<8x5xf32> -> vector<8x5xf32>
    %c0_9 = arith.constant 0 : index
    %c0_10 = arith.constant 0 : index
    %11 = vector.load %arg5[%c0_9, %c0_10] : memref<1x5xf32, #tpu.memory_space<vmem>>, vector<1x5xf32>
    %12 = vector.broadcast %11 : vector<1x5xf32> to vector<8x5xf32>
    %13 = arith.addf %10, %12 : vector<8x5xf32>
    %c0_11 = arith.constant 0 : index
    %c0_12 = arith.constant 0 : index
    %14 = vector.load %arg6[%c0_11, %c0_12] : memref<8x5xf32, #tpu.memory_space<vmem>>, vector<8x5xf32>
    tpu.vector_store %arg6[%c0_11, %c0_12], %13 {strides = array<i32>} : memref<8x5xf32, #tpu.memory_space<vmem>>, vector<8x5xf32>,
    return
  }
  func.func @transform_0(%arg0: i32) -> (i32, i32) {
    %c0_i32 = arith.constant 0 : i32
    %c0_i32_0 = arith.constant 0 : i32
    return %arg0, %c0_i32 : i32, i32
  }
  func.func @transform_1(%arg0: i32) -> (i32, i32) {
    %c0_i32 = arith.constant 0 : i32
    %c0_i32_0 = arith.constant 0 : i32
    %c0_i32_1 = arith.constant 0 : i32
    return %c0_i32, %c0_i32_0 : i32, i32
  }
  func.func @transform_2(%arg0: i32) -> (i32, i32) {
    %c0_i32 = arith.constant 0 : i32
    %c0_i32_0 = arith.constant 0 : i32
    %c0_i32_1 = arith.constant 0 : i32
    return %c0_i32, %c0_i32_0 : i32, i32
  }
  func.func @transform_3(%arg0: i32) -> (i32, i32) {
    %c0_i32 = arith.constant 0 : i32
    %c0_i32_0 = arith.constant 0 : i32
    %c0_i32_1 = arith.constant 0 : i32
    return %c0_i32, %c0_i32_0 : i32, i32
  }
  func.func @transform_4(%arg0: i32) -> (i32, i32) {
    %c0_i32 = arith.constant 0 : i32
    %c0_i32_0 = arith.constant 0 : i32
    %c0_i32_1 = arith.constant 0 : i32
    return %c0_i32, %c0_i32_0 : i32, i32
  }
  func.func @transform_5(%arg0: i32) -> (i32, i32) {
    %c0_i32 = arith.constant 0 : i32
    %c0_i32_0 = arith.constant 0 : i32
    return %arg0, %c0_i32 : i32, i32
  }
}

</mosaic_0001>

<llo_original>
// kernel: tpu_custom_call.1
$region0: #{tpu_custom_call.1}
  #allocation0 [shape = 'u32[]', space=smem, size = 0x4, offset = 0x4, fixed_abs, tag = 'smem constant byte address 0x4 - core index']
  #allocation1 [shape = 'u32[144,128]{1,0:T(1,128)}', space=vmem, size = 0x12000, scoped, tag = 'internal scratch']
  %s0 = inlined_call_operand.vmem [shape: bf16[8,32], index: 0, kind: input, shape index: {}]
  %s1 = inlined_call_operand.vmem [shape: bf16[32,64], index: 1, kind: input, shape index: {}]
  %s2 = inlined_call_operand.vmem [shape: f32[1,64], index: 2, kind: input, shape index: {}]
  %s3 = inlined_call_operand.vmem [shape: bf16[64,5], index: 3, kind: input, shape index: {}]
  %s4 = inlined_call_operand.vmem [shape: f32[1,5], index: 4, kind: input, shape index: {}]
  %s5 = inlined_call_operand.hbm [shape: f32[8,5], index: 5, kind: output, shape index: {}]
  %s6 = sld [smem:[#allocation0]]
  $region30: #{tpu_custom_call.1} parent=0
    _
  %s8 = ssub.s32 1, %s6
  %s9 = scalar_select 0, %s8, %s6
  $region1: #{tpu_custom_call.1} parent=0
    #allocation2 [shape = 'u8[4096]{0}', space=vmem, size = 0x1000, scoped, tag = 'output window, operand 0, single buffered']
    #allocation3 [shape = 's32[1]{0}', space=sflag, size = 0x4, scoped, tag = 'scoped memory for tpu_custom_call.1']
    %10 = vsyncpa [#allocation3], 0
    // Predicated region
    $region2: #{tpu_custom_call.1} parent=1 // pred_check
      _
    $region3: #{tpu_custom_call.1} parent=1 // pred_check_branch
      %12 = sbr.rel (0) target = $region5
    $region4: #{tpu_custom_call.1} parent=1 // pred_region
      _
    $region5: #{tpu_custom_call.1} parent=1 // pred_fallthru
      _
    // Predicated region
    $region6: #{tpu_custom_call.1} parent=1 // pred_check
      _
    $region7: #{tpu_custom_call.1} parent=1 // pred_check_branch
      %14 = sbr.rel (0) target = $region9
    $region8: #{tpu_custom_call.1} parent=1 // pred_region
      _
    $region9: #{tpu_custom_call.1} parent=1 // pred_fallthru
      _
    // Predicated region
    $region10: #{tpu_custom_call.1} parent=1 // pred_check
      _
    $region11: #{tpu_custom_call.1} parent=1 // pred_check_branch
      %16 = sbr.rel (0) target = $region13
    $region12: #{tpu_custom_call.1} parent=1 // pred_region
      _
    $region13: #{tpu_custom_call.1} parent=1 // pred_fallthru
      _
    // Predicated region
    $region14: #{tpu_custom_call.1} parent=1 // pred_check
      _
    $region15: #{tpu_custom_call.1} parent=1 // pred_check_branch
      %18 = sbr.rel (0) target = $region17
    $region16: #{tpu_custom_call.1} parent=1 // pred_region
      _
    $region17: #{tpu_custom_call.1} parent=1 // pred_fallthru
      _
    // Predicated region
    $region18: #{tpu_custom_call.1} parent=1 // pred_check
      _
    $region19: #{tpu_custom_call.1} parent=1 // pred_check_branch
      %20 = sbr.rel (0) target = $region21
    $region20: #{tpu_custom_call.1} parent=1 // pred_region
      _
    $region21: #{tpu_custom_call.1} parent=1 // pred_fallthru
      _
    %v22 = vld [vmem:[%s0] sm:$0xf]
    %v23 = vld [vmem:[%s1] sm:$0xf]
    %v24 = vld [vmem:[%s1 + $0x4] sm:$0xf]
    %v25 = vld [vmem:[%s1 + $0x8] sm:$0xf]
    %v26 = vld [vmem:[%s1 + $0xc] sm:$0xf]
    %v27 = vld [vmem:[%s2] sm:$0x1]
    %v29 = vlaneseq
    %v30 = vshrl.u32 %v29, 7
    %v31 = vsub.s32 0, %v30
    %v32 = vrot.slane %v27, %v31
    %v38 = vunpack.c.l.b16 %v23
    %v39 = vunpack.c.l.b16 %v24
    %v40 = vunpack.c.l.b16 %v25
    %v41 = vunpack.c.l.b16 %v26
    %v42 = vpack.c.b16 %v39, %v38
    %v43 = vpack.c.b16 %v41, %v40
    %vm46 = vcmask 261120
    %v48 = vsel %vm46, %v22, 0
    %50 = vmatprep.subr.bf16.mxu0 0
    %51 = vmatpush1.bf16.msra.mxu0 0
    %52 = vmatprep.subr.bf16.mxu0 0
    %53 = vmatpush1.bf16.msra.mxu0 0
    %54 = vmatprep.subr.bf16.mxu0 0
    %55 = vmatpush1.bf16.msra.mxu0 0
    %56 = vmatprep.subr.bf16.mxu0 0
    %57 = vmatpush1.bf16.msra.mxu0 0
    %58 = vmatprep.subr.bf16.mxu0 0
    %59 = vmatpush1.bf16.msra.mxu0 0
    %60 = vmatprep.subr.bf16.mxu0 0
    %61 = vmatpush1.bf16.msra.mxu0 0
    %62 = vmatprep.subr.bf16.mxu0 0
    %63 = vmatpush1.bf16.msra.mxu0 %v43
    %64 = vmatprep.subr.bf16.mxu0 0
    %65 = vmatpush1.bf16.msra.mxu0 %v42
    %66 = vmatprep.subr.bf16.mxu0 0
    %67 = vmatpush2.bf16.msra.mxu0 0
    %68 = vmatprep.subr.bf16.mxu0 0
    %69 = vmatpush2.bf16.msra.mxu0 0
    %70 = vmatprep.subr.bf16.mxu0 0
    %71 = vmatpush2.bf16.msra.mxu0 0
    %72 = vmatprep.subr.bf16.mxu0 0
    %73 = vmatpush2.bf16.msra.mxu0 0
    %74 = vmatprep.subr.bf16.mxu0 0
    %75 = vmatpush2.bf16.msra.mxu0 0
    %76 = vmatprep.subr.bf16.mxu0 0
    %77 = vmatpush2.bf16.msra.mxu0 0
    %78 = vmatprep.subr.bf16.mxu0 0
    %79 = vmatpush2.bf16.msra.mxu0 0
    %80 = vmatprep.subr.bf16.mxu0 0
    %81 = vmatpush2.bf16.msra.mxu0 0
    %82 = vmatprep.mubr.bf16.mxu0 0
    %83 = vmatmul.mubr.bf16.gmra.mxu0 %v48
    %v84 = vpop.f32.mrf.mxu0
    %v85 = vadd.f32 %v32, %v84
    %v86 = vpop.f32.mrf.mxu0
    %v87 = vpop.f32.mrf.mxu0
    %v88 = vpop.f32.mrf.mxu0
    %89 = vdwg.mxu0
    %v90 = vmax.f32 %v85, 0.0
    %v91 = vpack.c.bf16 %v90, %v90
    %v92 = vld [vmem:[%s3] sm:$0xf]
    %v93 = vld [vmem:[%s3 + $0x4] sm:$0xf]
    %v94 = vld [vmem:[%s3 + $0x8] sm:$0xf]
    %v95 = vld [vmem:[%s3 + $0xc] sm:$0xf]
    %v96 = vld [vmem:[%s3 + $0x10] sm:$0xf]
    %v97 = vld [vmem:[%s3 + $0x14] sm:$0xf]
    %v98 = vld [vmem:[%s3 + $0x18] sm:$0xf]
    %v99 = vld [vmem:[%s3 + $0x1c] sm:$0xf]
    %v100 = vld [vmem:[%s4] sm:$0x1]
    %v102 = vlaneseq
    %v103 = vshrl.u32 %v102, 7
    %v104 = vsub.s32 0, %v103
    %v105 = vrot.slane %v100, %v104
    %v115 = vunpack.c.l.b16 %v92
    %v116 = vunpack.c.l.b16 %v93
    %v117 = vunpack.c.l.b16 %v94
    %v118 = vunpack.c.l.b16 %v95
    %v119 = vunpack.c.l.b16 %v96
    %v120 = vunpack.c.l.b16 %v97
    %v121 = vunpack.c.l.b16 %v98
    %v122 = vunpack.c.l.b16 %v99
    %v123 = vpack.c.b16 %v116, %v115
    %v124 = vpack.c.b16 %v118, %v117
    %v125 = vpack.c.b16 %v120, %v119
    %v126 = vpack.c.b16 %v122, %v121
    %vm131 = vcmask 523264
    %v133 = vsel %vm131, %v91, 0
    %135 = vmatprep.subr.bf16.mxu0 0
    %136 = vmatpush1.bf16.msra.mxu0 0
    %137 = vmatprep.subr.bf16.mxu0 0
    %138 = vmatpush1.bf16.msra.mxu0 0
    %139 = vmatprep.subr.bf16.mxu0 0
    %140 = vmatpush1.bf16.msra.mxu0 0
    %141 = vmatprep.subr.bf16.mxu0 0
    %142 = vmatpush1.bf16.msra.mxu0 0
    %143 = vmatprep.subr.bf16.mxu0 0
    %144 = vmatpush1.bf16.msra.mxu0 %v126
    %145 = vmatprep.subr.bf16.mxu0 0
    %146 = vmatpush1.bf16.msra.mxu0 %v125
    %147 = vmatprep.subr.bf16.mxu0 0
    %148 = vmatpush1.bf16.msra.mxu0 %v124
    %149 = vmatprep.subr.bf16.mxu0 0
    %150 = vmatpush1.bf16.msra.mxu0 %v123
    %151 = vmatprep.subr.bf16.mxu0 0
    %152 = vmatpush2.bf16.msra.mxu0 0
    %153 = vmatprep.subr.bf16.mxu0 0
    %154 = vmatpush2.bf16.msra.mxu0 0
    %155 = vmatprep.subr.bf16.mxu0 0
    %156 = vmatpush2.bf16.msra.mxu0 0
    %157 = vmatprep.subr.bf16.mxu0 0
    %158 = vmatpush2.bf16.msra.mxu0 0
    %159 = vmatprep.subr.bf16.mxu0 0
    %160 = vmatpush2.bf16.msra.mxu0 0
    %161 = vmatprep.subr.bf16.mxu0 0
    %162 = vmatpush2.bf16.msra.mxu0 0
    %163 = vmatprep.subr.bf16.mxu0 0
    %164 = vmatpush2.bf16.msra.mxu0 0
    %165 = vmatprep.subr.bf16.mxu0 0
    %166 = vmatpush2.bf16.msra.mxu0 0
    %167 = vmatprep.mubr.bf16.mxu0 0
    %168 = vmatmul.mubr.bf16.gmra.mxu0 %v133
    %v169 = vpop.f32.mrf.mxu0
    %v170 = vadd.f32 %v105, %v169
    %v171 = vpop.f32.mrf.mxu0
    %v172 = vpop.f32.mrf.mxu0
    %v173 = vpop.f32.mrf.mxu0
    %174 = vdwg.mxu0
    %vm175 = vcmask 39936
    %176 = vst.msk [vmem:[#allocation2] sm:$0xff] %vm175, %v170
    // Predicated region
    $region22: #{tpu_custom_call.1} parent=1 // pred_check
      _
    $region23: #{tpu_custom_call.1} parent=1 // pred_check_branch
      %178 = sbr.rel (0) target = $region25
    $region24: #{tpu_custom_call.1} parent=1 // pred_region
      %s180 = ssub.s32 128, 128
      %181 = vsyncadd [#allocation3], %s180
      %s183 = sshll.u32 [#allocation2], 4
      %s184 = int_to_ptr.vmem [resolvable:$true] %s183
      %186 = dma.vmem_to_hbm [thread:$0]  %s184, 128, %s5, [#allocation3]
    $region25: #{tpu_custom_call.1} parent=1 // pred_fallthru
      _
    // Predicated region
    $region26: #{tpu_custom_call.1} parent=1 // pred_check
      _
    $region27: #{tpu_custom_call.1} parent=1 // pred_check_branch
      %188 = sbr.rel (0) target = $region29
    $region28: #{tpu_custom_call.1} parent=1 // pred_region
      %189 = dma.done [#allocation3], 128
    $region29: #{tpu_custom_call.1} parent=1 // pred_fallthru
      _
    %190 = vsyncpa [#allocation3], 1

</llo_original>
